<compile_context>
chip_gen: v5e
topology: v5e:2x2
jax: 0.10.0
libtpu: 0.0.40
codegen_flags: <defaults>
</compile_context>

<pallas_src>
import functools

import jax
import jax.numpy as jnp
from jax import lax
from jax.experimental import pallas as pl
from jax.experimental.pallas import tpu as pltpu


# ------------------------------- kernels ------------------------------------


def _gram_kernel_single(f_ref, g_ref, *, inv_total):
    """Whole-N gram: accumulate f @ f.T over the K grid axis into g_ref."""
    k = pl.program_id(0)

    @pl.when(k == 0)
    def _():
        g_ref[...] = jnp.zeros_like(g_ref)

    f = f_ref[...]  # (N, tk) bf16 tile
    # Contract on the last dim of both operands -> no explicit transpose.
    g_ref[...] += lax.dot_general(
        f, f,
        dimension_numbers=(((1,), (1,)), ((), ())),
        preferred_element_type=jnp.float32,
    )

    @pl.when(k == pl.num_programs(0) - 1)
    def _():
        g_ref[...] *= inv_total


def _gram_kernel_tiled(rows_ref, cols_ref, g_ref, *, inv_total):
    """Row-block-parallel gram: rows (tn, tk) x cols (N, tk) -> (tn, N)."""
    k = pl.program_id(1)

    @pl.when(k == 0)
    def _():
        g_ref[...] = jnp.zeros_like(g_ref)

    g_ref[...] += lax.dot_general(
        rows_ref[...], cols_ref[...],
        dimension_numbers=(((1,), (1,)), ((), ())),
        preferred_element_type=jnp.float32,
    )

    @pl.when(k == pl.num_programs(1) - 1)
    def _():
        g_ref[...] *= inv_total


# ------------------------------- wrapper ------------------------------------

_VMEM_BUDGET_BYTES = 40 * 1024 * 1024   # conservative: fits v7x (64 MiB phys)
_VMEM_LIMIT_BYTES = 48 * 1024 * 1024    # scoped limit passed to Mosaic
_TK_CAP = 8192                          # cap on the contraction tile width


def _round_up(x, m):
    return ((x + m - 1) // m) * m


def gram_matrix_pallas(x, compute_dtype=jnp.bfloat16):
    """gram_matrix(x) = (view(a*b, c*d) @ view.T) / (a*b*c*d), via Pallas."""
    a, b, c, d = x.shape
    N = a * b
    M = c * d
    inv_total = 1.0 / float(a * b * c * d)

    feats = x.reshape(N, M).astype(compute_dtype)
    itemsize = jnp.dtype(compute_dtype).itemsize

    # Row tiling: only split the output rows when N is large enough to matter
    # (gives the v7x megacore a "parallel" axis; no-op for small style layers).
    if N >= 512 and N % 256 == 0:
        tn = 256
    elif N >= 256 and N % 128 == 0:
        tn = 128
    else:
        tn = N

    # Size the K tile from a per-generation-safe VMEM budget: double-buffered
    # feature inputs + (conservatively) two f32 output buffers must fit.
    if tn == N:
        per_k_col_bytes = N * itemsize * 2            # one feature stream, 2 bufs
        fixed_bytes = N * N * 4 * 2                   # f32 gram output buffers
    else:
        per_k_col_bytes = (tn + N) * itemsize * 2     # rows + cols streams, 2 bufs
        fixed_bytes = tn * N * 4 * 2
    tk = (_VMEM_BUDGET_BYTES - fixed_bytes) // max(per_k_col_bytes, 1)
    tk = max(128, (tk // 128) * 128)
    tk = min(tk, _TK_CAP, _round_up(M, 128))

    # Zero-pad the contraction axis so tk tiles it exactly (zeros add nothing
    # to the gram).  Never falls back to a full-width (N, M) block.
    M_pad = _round_up(M, tk)
    if M_pad != M:
        feats = jnp.pad(feats, ((0, 0), (0, M_pad - M)))

    compiler_params = pltpu.CompilerParams(
        dimension_semantics=("arbitrary",) if tn == N else ("parallel", "arbitrary"),
        vmem_limit_bytes=_VMEM_LIMIT_BYTES,
    )

    if tn == N:
        # Single output row block: one feature stream, DMA'd once per K tile.
        gram = pl.pallas_call(
            functools.partial(_gram_kernel_single, inv_total=inv_total),
            out_shape=jax.ShapeDtypeStruct((N, N), jnp.float32),
            grid_spec=pltpu.PrefetchScalarGridSpec(
                num_scalar_prefetch=0,
                grid=(M_pad // tk,),
                in_specs=[pl.BlockSpec((N, tk), lambda k: (0, k))],
                out_specs=pl.BlockSpec((N, N), lambda k: (0, 0)),
            ),
            compiler_params=compiler_params,
        )(feats)
    else:
        # Parallel over output row blocks (uses both TCs on v7x).
        gram = pl.pallas_call(
            functools.partial(_gram_kernel_tiled, inv_total=inv_total),
            out_shape=jax.ShapeDtypeStruct((N, N), jnp.float32),
            grid_spec=pltpu.PrefetchScalarGridSpec(
                num_scalar_prefetch=0,
                grid=(N // tn, M_pad // tk),
                in_specs=[
                    pl.BlockSpec((tn, tk), lambda i, k: (i, k)),  # row block
                    pl.BlockSpec((N, tk), lambda i, k: (0, k)),   # all columns
                ],
                out_specs=pl.BlockSpec((tn, N), lambda i, k: (i, 0)),
            ),
            compiler_params=compiler_params,
        )(feats, feats)

    return gram


class StyleLossPallas:
    """Mirrors torch StyleLoss: caches target gram, forward stores MSE loss."""

    def __init__(self, target_feature):
        self.target = gram_matrix_pallas(target_feature)
        self.loss = None

    def forward(self, x):
        G = gram_matrix_pallas(x)
        # MSE epilogue in plain JAX (O(N^2) elementwise; negligible vs the gram).
        self.loss = jnp.mean((G - self.target) ** 2)
        return x  # passthrough, same as the PyTorch module


# ------------------------------- references ---------------------------------


def _reference_loss(x, target_feature, compute_dtype=jnp.float32):
    """Pure-JAX reference (optionally with bf16-rounded features)."""
    def gram(t):
        a, b, c, d = t.shape
        f = t.reshape(a * b, c * d).astype(compute_dtype).astype(jnp.float32)
        g = jnp.dot(f, f.T, precision=lax.Precision.HIGHEST)
        return g / (a * b * c * d)
    g = gram(x)
    tg = gram(target_feature)
    return jnp.mean((g - tg) ** 2)


if __name__ == "__main__":
    key = jax.random.PRNGKey(0)
    k_in, k_tgt = jax.random.split(key)

    a, b, c, d = 2, 4, 16, 16  # NCHW, small shapes
    x = jax.random.normal(k_in, (a, b, c, d), dtype=jnp.float32)
    target_feature = jax.random.normal(k_tgt, (a, b, c, d), dtype=jnp.float32)

    module = StyleLossPallas(target_feature)
    out = module.forward(x)

    out = jax.block_until_ready(out)
    loss = jax.block_until_ready(module.loss)

    # Tight check against a reference using the same bf16-rounded features.
    ref_bf16 = _reference_loss(x, target_feature, compute_dtype=jnp.bfloat16)
    assert jnp.allclose(loss, ref_bf16, rtol=5e-3, atol=1e-6), (loss, ref_bf16)

    # Loose check against the exact f32 reference (bf16 feature rounding only).
    ref_f32 = _reference_loss(x, target_feature, compute_dtype=jnp.float32)
    assert jnp.allclose(loss, ref_f32, rtol=1e-1, atol=1e-4), (loss, ref_f32)

    assert out.shape == x.shape and jnp.allclose(out, x)

    print("KERNEL_OK")
</pallas_src>

<mosaic_0001>
module attributes {stable_mosaic.version = 11 : i64} {
  func.func @_gram_kernel_single(%arg0: i32, %arg1: memref<8x256xbf16, #tpu.memory_space<vmem>>, %arg2: memref<8x8xf32, #tpu.memory_space<vmem>>) attributes {dimension_semantics = [#tpu.dimension_semantics<arbitrary>], iteration_bounds = array<i64: 1>, scalar_prefetch = 0 : i64, scratch_operands = 0 : i64, tpu.core_type = #tpu.core_type<tc>, window_params = [{transform_indices = @transform_0, window_bounds = array<i64: 8, 256>}, {pipeline_mode = #tpu.pipeline_mode<synchronous>, transform_indices = @transform_1, window_bounds = array<i64: 8, 8>}]} {
    %c0_i32 = arith.constant 0 : i32
    %0 = arith.cmpi eq, %arg0, %c0_i32 : i32
    %1 = arith.extui %0 : i1 to i32
    %c0_i32_0 = arith.constant 0 : i32
    %2 = arith.cmpi ne, %1, %c0_i32_0 : i32
    scf.if %2 {
      %cst_8 = arith.constant 0.000000e+00 : f32
      %11 = vector.broadcast %cst_8 : f32 to vector<8x8xf32>
      %c0_9 = arith.constant 0 : index
      %c0_10 = arith.constant 0 : index
      %12 = vector.load %arg2[%c0_9, %c0_10] : memref<8x8xf32, #tpu.memory_space<vmem>>, vector<8x8xf32>
      tpu.vector_store %arg2[%c0_9, %c0_10], %11 {strides = array<i32>} : memref<8x8xf32, #tpu.memory_space<vmem>>, vector<8x8xf32>,
    } else {
    }
    %c0 = arith.constant 0 : index
    %c0_1 = arith.constant 0 : index
    %3 = vector.load %arg1[%c0, %c0_1] : memref<8x256xbf16, #tpu.memory_space<vmem>>, vector<8x256xbf16>
    %c0_2 = arith.constant 0 : index
    %c0_3 = arith.constant 0 : index
    %4 = vector.load %arg2[%c0_2, %c0_3] : memref<8x8xf32, #tpu.memory_space<vmem>>, vector<8x8xf32>
    %cst = arith.constant dense<0.000000e+00> : vector<8x8xf32>
    %5 = tpu.matmul %3, %3, %cst {dimension_numbers = #tpu.dot_dimension_numbers<[1], [1], [0], [0], [0, 0, 1, 0], [], []>} : vector<8x256xbf16>, vector<8x256xbf16>, vector<8x8xf32> -> vector<8x8xf32>
    %6 = arith.addf %4, %5 : vector<8x8xf32>
    %c0_4 = arith.constant 0 : index
    %c0_5 = arith.constant 0 : index
    %7 = vector.load %arg2[%c0_4, %c0_5] : memref<8x8xf32, #tpu.memory_space<vmem>>, vector<8x8xf32>
    tpu.vector_store %arg2[%c0_4, %c0_5], %6 {strides = array<i32>} : memref<8x8xf32, #tpu.memory_space<vmem>>, vector<8x8xf32>,
    %c0_i32_6 = arith.constant 0 : i32
    %8 = arith.cmpi eq, %arg0, %c0_i32_6 : i32
    %9 = arith.extui %8 : i1 to i32
    %c0_i32_7 = arith.constant 0 : i32
    %10 = arith.cmpi ne, %9, %c0_i32_7 : i32
    scf.if %10 {
      %c0_8 = arith.constant 0 : index
      %c0_9 = arith.constant 0 : index
      %11 = vector.load %arg2[%c0_8, %c0_9] : memref<8x8xf32, #tpu.memory_space<vmem>>, vector<8x8xf32>
      %cst_10 = arith.constant 4.8828125E-4 : f32
      %12 = vector.broadcast %cst_10 : f32 to vector<8x8xf32>
      %13 = arith.mulf %11, %12 : vector<8x8xf32>
      %c0_11 = arith.constant 0 : index
      %c0_12 = arith.constant 0 : index
      %14 = vector.load %arg2[%c0_11, %c0_12] : memref<8x8xf32, #tpu.memory_space<vmem>>, vector<8x8xf32>
      tpu.vector_store %arg2[%c0_11, %c0_12], %13 {strides = array<i32>} : memref<8x8xf32, #tpu.memory_space<vmem>>, vector<8x8xf32>,
    } else {
    }
    return
  }
  func.func @transform_0(%arg0: i32) -> (i32, i32) {
    %c0_i32 = arith.constant 0 : i32
    %c0_i32_0 = arith.constant 0 : i32
    return %c0_i32, %arg0 : i32, i32
  }
  func.func @transform_1(%arg0: i32) -> (i32, i32) {
    %c0_i32 = arith.constant 0 : i32
    %c0_i32_0 = arith.constant 0 : i32
    %c0_i32_1 = arith.constant 0 : i32
    return %c0_i32, %c0_i32_0 : i32, i32
  }
}

</mosaic_0001>

<llo_original>
// kernel: tpu_custom_call.1
$region0: #{tpu_custom_call.1}
  #allocation0 [shape = 'u32[]', space=smem, size = 0x4, offset = 0x4, fixed_abs, tag = 'smem constant byte address 0x4 - core index']
  #allocation1 [shape = 'u32[72,128]{1,0:T(1,128)}', space=vmem, size = 0x9000, scoped, tag = 'internal scratch']
  %s0 = inlined_call_operand.hbm [shape: bf16[8,256], index: 0, kind: input, shape index: {}]
  %s1 = inlined_call_operand.hbm [shape: f32[8,8], index: 1, kind: output, shape index: {}]
  %s2 = sld [smem:[#allocation0]]
  $region26: #{tpu_custom_call.1} parent=0
    _
  %s4 = ssub.s32 1, %s2
  %s5 = scalar_select 0, %s4, %s2
  $region1: #{tpu_custom_call.1} parent=0
    #allocation2 [shape = 'u8[4096]{0}', space=vmem, size = 0x1000, scoped, tag = 'input window, operand 0, single buffered']
    #allocation3 [shape = 's32[1]{0}', space=sflag, size = 0x4, scoped, tag = 'scoped memory for tpu_custom_call.1']
    #allocation4 [shape = 's32[1]{0}', space=sflag, size = 0x4, scoped, tag = 'scoped memory for tpu_custom_call.1']
    #allocation5 [shape = 'u8[4096]{0}', space=vmem, size = 0x1000, scoped, tag = 'output window, operand 0, single buffered']
    %6 = vsyncpa [#allocation3], 0
    %7 = vsyncpa [#allocation4], 0
    // Predicated region
    $region2: #{tpu_custom_call.1} parent=1 // pred_check
      _
    $region3: #{tpu_custom_call.1} parent=1 // pred_check_branch
      %9 = sbr.rel (0) target = $region5
    $region4: #{tpu_custom_call.1} parent=1 // pred_region
      %11 = vsyncadd [#allocation3], 0
      %s13 = sshll.u32 %s0, 4
      %s14 = int_to_ptr.hbm [resolvable:$true] %s13
      %s15 = sshll.u32 [#allocation2], 4
      %s16 = int_to_ptr.vmem [resolvable:$true] %s15
      %18 = dma.hbm_to_vmem [thread:$0]  %s14, 128, %s16, [#allocation3]
    $region5: #{tpu_custom_call.1} parent=1 // pred_fallthru
      _
    // Predicated region
    $region6: #{tpu_custom_call.1} parent=1 // pred_check
      _
    $region7: #{tpu_custom_call.1} parent=1 // pred_check_branch
      %20 = sbr.rel (0) target = $region9
    $region8: #{tpu_custom_call.1} parent=1 // pred_region
      %22 = dma.done [#allocation3], 128
    $region9: #{tpu_custom_call.1} parent=1 // pred_fallthru
      _
    %p24 = scmp.eq.s32.totalorder 0, 0
    // Predicated region
    $region10: #{tpu_custom_call.1} parent=1 // pred_check
      %p25 = pneg %p24
    $region11: #{tpu_custom_call.1} parent=1 // pred_check_branch
      %27 = sbr.rel (%p25) target = $region13
    $region12: #{tpu_custom_call.1} parent=1 // pred_region
      %vm28 = vcmask 64512
      %29 = vst.msk [vmem:[#allocation5] sm:$0xff] %vm28, 0.0
    $region13: #{tpu_custom_call.1} parent=1 // pred_fallthru
      _
    %v30 = vld [vmem:[#allocation2] sm:$0xff]
    %v31 = vld [vmem:[#allocation5] sm:$0xff]
    %v33 = vunpack.c.l.b16 %v30
    %v34 = vunpack.c.h.b16 %v30
    %v35 = vpack.c.b16 %v33, %v33
    %v36 = vpack.c.b16 %v34, %v34
    %39 = vmatpush.bf16.xpose.msra.mxu0 0
    %40 = vmatpush.bf16.xpose.msra.mxu0 0
    %41 = vmatpush.bf16.xpose.msra.mxu0 0
    %42 = vmatpush.bf16.xpose.msra.mxu0 0
    %43 = vmatpush.bf16.xpose.msra.mxu0 0
    %44 = vmatpush.bf16.xpose.msra.mxu0 0
    %45 = vmatpush.bf16.xpose.msra.mxu0 0
    %46 = vmatpush.bf16.xpose.msra.mxu0 %v35
    %47 = vmatmul.bf16.gmra.mxu0 %v35
    %v48 = vpop.f32.mrf.mxu0
    %v49 = vadd.f32 0.0, %v48
    %v50 = vpop.f32.mrf.mxu0
    %51 = vdwg.mxu0
    %52 = vmatpush.bf16.xpose.msra.mxu0 0
    %53 = vmatpush.bf16.xpose.msra.mxu0 0
    %54 = vmatpush.bf16.xpose.msra.mxu0 0
    %55 = vmatpush.bf16.xpose.msra.mxu0 0
    %56 = vmatpush.bf16.xpose.msra.mxu0 0
    %57 = vmatpush.bf16.xpose.msra.mxu0 0
    %58 = vmatpush.bf16.xpose.msra.mxu0 0
    %59 = vmatpush.bf16.xpose.msra.mxu0 %v36
    %60 = vmatmul.bf16.gmra.mxu0 %v36
    %v61 = vpop.f32.mrf.mxu0
    %v62 = vadd.f32 %v49, %v61
    %v63 = vpop.f32.mrf.mxu0
    %64 = vdwg.mxu0
    %v65 = vadd.f32 %v31, %v62
    %vm66 = vcmask 64512
    %67 = vst.msk [vmem:[#allocation5] sm:$0xff] %vm66, %v65
    // Predicated region
    $region14: #{tpu_custom_call.1} parent=1 // pred_check
      %p68 = pneg %p24
    $region15: #{tpu_custom_call.1} parent=1 // pred_check_branch
      %70 = sbr.rel (%p68) target = $region17
    $region16: #{tpu_custom_call.1} parent=1 // pred_region
      %v71 = vld [vmem:[#allocation5] sm:$0xff]
      %v72 = vmul.f32 %v71, 0.00048828125
      %73 = vst.msk [vmem:[#allocation5] sm:$0xff] %vm66, %v72
    $region17: #{tpu_custom_call.1} parent=1 // pred_fallthru
      _
    // Predicated region
    $region18: #{tpu_custom_call.1} parent=1 // pred_check
      _
    $region19: #{tpu_custom_call.1} parent=1 // pred_check_branch
      %75 = sbr.rel (0) target = $region21
    $region20: #{tpu_custom_call.1} parent=1 // pred_region
      %77 = vsyncadd [#allocation4], 0
      %s79 = sshll.u32 [#allocation5], 4
      %s80 = int_to_ptr.vmem [resolvable:$true] %s79
      %s81 = sshll.u32 %s1, 4
      %s82 = int_to_ptr.hbm [resolvable:$true] %s81
      %84 = dma.vmem_to_hbm [thread:$0]  %s80, 128, %s82, [#allocation4]
    $region21: #{tpu_custom_call.1} parent=1 // pred_fallthru
      _
    // Predicated region
    $region22: #{tpu_custom_call.1} parent=1 // pred_check
      _
    $region23: #{tpu_custom_call.1} parent=1 // pred_check_branch
      %86 = sbr.rel (0) target = $region25
    $region24: #{tpu_custom_call.1} parent=1 // pred_region
      %88 = dma.done [#allocation4], 128
    $region25: #{tpu_custom_call.1} parent=1 // pred_fallthru
      _
    %89 = vsyncpa [#allocation3], 1
    %90 = vsyncpa [#allocation4], 1

</llo_original>
